<compile_context>
chip_gen: v7x
topology: tpu7x:2x2x1
jax: 0.10.0
libtpu: 0.0.40
codegen_flags: <defaults>
</compile_context>

<pallas_src>
import functools

import jax
import jax.numpy as jnp
from jax.experimental import pallas as pl
from jax.experimental.pallas import tpu as pltpu


def _softplus(x):
    # Matches torch.nn.functional.softplus (beta=1, threshold=20).
    return jnp.where(x > 20.0, x, jnp.log1p(jnp.exp(jnp.minimum(x, 20.0))))


def _round_up(n, m):
    return ((n + m - 1) // m) * m


def _hetxl_kernel(x_ref, wbig_ref, bbig_ref, exp_ref, eps_d_ref, eps_r_ref, o_ref,
                  *, SDp, R, inv_temp, min_scale):
    """One batch tile (TB rows) per grid step.

    Column layout of `big` (each block SDp lanes, SDp a multiple of 128, so every slice
    below is whole-vreg aligned):
        [0,        SDp)  : feat, tiled over samples           (col s*D+d = feat[d])
        [SDp,    2*SDp)  : diag-std pre-activation, tiled
        [(2+r)*SDp, ...) : low-rank factor for rank r, tiled  (col s*D+d = low_rank[d, r])
    """
    x = x_ref[...]                                              # (TB, F_in)

    # Single MXU matmul: classifier + diag-std + all low-rank blocks, already broadcast
    # (tiled) across the S MC samples -> no in-kernel lane concat / reshape.
    big = jnp.dot(x, wbig_ref[...],
                  preferred_element_type=jnp.float32) + bbig_ref[...]   # (TB, (2+R)*SDp)

    feat_t = big[:, :SDp]                                       # (TB, SDp)
    diag_std = _softplus(big[:, SDp:2 * SDp]) + min_scale       # (TB, SDp)

    eps_d = eps_d_ref[...].astype(jnp.float32)                  # (TB, SDp)

    # Broadcast eps_r[b, s, r] across the D lanes of each sample with ONE matmul against
    # a 0/1 block-diagonal expander (replaces R tiny K=S matmuls; full 128-lane K).
    eps_r_exp = jnp.dot(eps_r_ref[...], exp_ref[...],
                        preferred_element_type=jnp.float32)     # (TB, R*SDp)

    acc = feat_t + diag_std * eps_d
    for r in range(R):  # R is tiny & static: unrolled VPU FMAs on aligned 128-lane slices
        acc = acc + (big[:, (2 + r) * SDp:(3 + r) * SDp] *
                     eps_r_exp[:, r * SDp:(r + 1) * SDp])

    # 1/temperature fused into the single elementwise/store pass.
    o_ref[...] = (acc * inv_temp).astype(o_ref.dtype)


def hetxl_head_forward(x, wc, bc, wl, bl, wd, bd, eps_d, eps_r,
                       *, matrix_rank, num_mc_samples, temperature):
    B, F_in = x.shape
    D = wc.shape[1]
    R = matrix_rank
    S = num_mc_samples

    SD = S * D
    SDp = _round_up(SD, 128)          # lane-aligned block width
    RS = R * S
    RSp = _round_up(RS, 128)          # lane-dense eps_r load
    f32 = jnp.float32

    # --- wrapper-side weight fusion (small-D fast path) -----------------------
    # W_big = [ tile_S(wc) | tile_S(wc @ wd) | tile_S((wc @ wl)_{r=0}) | ... ]
    def tile_block(w_cols, b_cols):
        wt = jnp.tile(w_cols, (1, S)).astype(f32)               # col s*D+d = w_cols[:, d]
        bt = jnp.tile(b_cols, (1, S)).astype(f32)
        if SDp != SD:
            wt = jnp.pad(wt, ((0, 0), (0, SDp - SD)))
            bt = jnp.pad(bt, ((0, 0), (0, SDp - SD)))
        return wt, bt

    w_feat, b_feat = tile_block(wc, bc)
    w_diag, b_diag = tile_block(wc @ wd, bc @ wd + bd)

    # Low-rank weight: torch reshape(-1, D, R) => linear output column d*R + r is (d, r).
    wl_rd = wl.reshape(D, D, R).transpose(0, 2, 1).reshape(D, R * D)    # col r*D + d
    bl_rd = bl.reshape(1, D, R).transpose(0, 2, 1).reshape(1, R * D)
    wc_lr = wc @ wl_rd                                                   # (F_in, R*D)
    bc_lr = bc @ wl_rd + bl_rd                                           # (1,   R*D)
    w_blocks, b_blocks = [w_feat, w_diag], [b_feat, b_diag]
    for r in range(R):
        wt, bt = tile_block(wc_lr[:, r * D:(r + 1) * D], bc_lr[:, r * D:(r + 1) * D])
        w_blocks.append(wt)
        b_blocks.append(bt)
    w_big = jnp.concatenate(w_blocks, axis=1)                    # (F_in, (2+R)*SDp)
    b_big = jnp.concatenate(b_blocks, axis=1)                    # (1,    (2+R)*SDp)
    n_cols = (2 + R) * SDp

    # 0/1 block-diagonal expander: (eps_r_flat @ E)[b, r*SDp + s*D + d] = eps_r[b, s, r].
    rows = jnp.arange(RSp)[:, None]
    cols = jnp.arange(R * SDp)[None, :]
    r_c, sd_c = cols // SDp, cols % SDp
    expander = ((rows == r_c * S + sd_c // D) & (sd_c < SD) & (rows < RS)).astype(f32)

    # --- batch tiling ----------------------------------------------------------
    # Large tiles amortize per-grid-step overhead and issue big DMAs (mem-bound at
    # production sizes); >= 2 grid steps when the batch allows (v7x has 2 TensorCores).
    TB = min(256, _round_up(B, 8))
    if 16 <= B <= 256:
        TB = _round_up(pl.cdiv(B, 2), 8)
    if B < TB:                         # tiny batch (demo): pad up to one tile (cheap)
        pad = TB - B
        x = jnp.pad(x, ((0, pad), (0, 0)))
        eps_d = jnp.pad(eps_d, ((0, pad), (0, 0), (0, 0)))
        eps_r = jnp.pad(eps_r, ((0, pad), (0, 0), (0, 0)))
    # else: no jnp.pad HBM copies — Pallas masks the ragged last tile's writes.
    B_run = x.shape[0]
    grid_b = pl.cdiv(B_run, TB)

    # Lane-dense noise layouts (eps_d carries S*D in the lane dim; eps_r is r-major flat,
    # padded to 128 lanes so its load is unmasked).
    eps_d_flat = eps_d.reshape(B_run, SD)
    if SDp != SD:
        eps_d_flat = jnp.pad(eps_d_flat, ((0, 0), (0, SDp - SD)))
    eps_r_flat = eps_r.transpose(0, 2, 1).reshape(B_run, RS)     # col r*S + s
    if RSp != RS:
        eps_r_flat = jnp.pad(eps_r_flat, ((0, 0), (0, RSp - RS)))

    # VMEM budget: ~3/4 of physical (v5e/v6e 128 MiB -> 96 MiB, v7x 64 MiB -> 48 MiB).
    try:
        vmem_cap = pltpu.get_tpu_info().vmem_capacity_bytes
    except Exception:
        vmem_cap = 64 * 1024 * 1024
    vmem_limit = int(min(96 * 1024 * 1024, (3 * vmem_cap) // 4))

    kernel = functools.partial(_hetxl_kernel, SDp=SDp, R=R,
                               inv_temp=1.0 / temperature, min_scale=1e-3)

    out_flat = pl.pallas_call(
        kernel,
        out_shape=jax.ShapeDtypeStruct((B_run, SDp), jnp.float32),
        grid=(grid_b,),
        in_specs=[
            pl.BlockSpec((TB, F_in), lambda b: (b, 0)),          # x (F_in < 128 -> masked vld; minor)
            pl.BlockSpec((F_in, n_cols), lambda b: (0, 0)),      # fused, sample-tiled weight
            pl.BlockSpec((1, n_cols), lambda b: (0, 0)),         # fused bias
            pl.BlockSpec((RSp, R * SDp), lambda b: (0, 0)),      # eps_r lane expander (0/1)
            pl.BlockSpec((TB, SDp), lambda b: (b, 0)),           # eps_d (lane-dense S*D)
            pl.BlockSpec((TB, RSp), lambda b: (b, 0)),           # eps_r (r-major, 128-lane)
        ],
        out_specs=pl.BlockSpec((TB, SDp), lambda b: (b, 0)),
        compiler_params=pltpu.CompilerParams(
            dimension_semantics=("parallel",),
            vmem_limit_bytes=vmem_limit),
    )(x, w_big, b_big, expander, eps_d_flat, eps_r_flat)

    return out_flat[:B, :SD].reshape(B, S, D)


def hetxl_head_ref(x, wc, bc, wl, bl, wd, bd, eps_d, eps_r,
                   *, matrix_rank, temperature):
    """Pure-JAX reference mirroring the PyTorch forward (use_het=True)."""
    feat = x @ wc + bc                                     # (B, D)
    B, D = feat.shape
    R = matrix_rank
    low_rank = (feat @ wl + bl).reshape(B, D, R)
    diag_std = _softplus(feat @ wd + bd) + 1e-3
    diag_samples = diag_std[:, None, :] * eps_d
    ein = jnp.einsum('bdr,bsr->bsd', low_rank, eps_r)
    samples = ein + diag_samples
    pre_logits = feat[:, None, :] + samples
    return pre_logits / temperature


if __name__ == "__main__":
    # Small shapes consistent with the module.
    B, F_IN = 2, 32          # batch, raw feature dim fed to the classifier
    D = 16                   # num_features (classifier output dim)
    R = 4                    # matrix_rank
    S = 8                    # num_mc_samples
    TEMPERATURE = 1.5

    key = jax.random.PRNGKey(0)
    ks = jax.random.split(key, 9)

    x = jax.random.normal(ks[0], (B, F_IN), dtype=jnp.float32)

    # Deterministic parameter init (weights stored as (in, out), biases (1, out)).
    wc = 0.1 * jax.random.normal(ks[1], (F_IN, D), dtype=jnp.float32)
    bc = 0.1 * jax.random.normal(ks[2], (1, D), dtype=jnp.float32)
    wl = 0.1 * jax.random.normal(ks[3], (D, D * R), dtype=jnp.float32)
    bl = 0.1 * jax.random.normal(ks[4], (1, D * R), dtype=jnp.float32)
    wd = 0.1 * jax.random.normal(ks[5], (D, D), dtype=jnp.float32)
    bd = 0.1 * jax.random.normal(ks[6], (1, D), dtype=jnp.float32)

    # Pre-drawn standard normals (stand-in for torch.randn at runtime).
    eps_d = jax.random.normal(ks[7], (B, S, D), dtype=jnp.float32)
    eps_r = jax.random.normal(ks[8], (B, S, R), dtype=jnp.float32)

    out = hetxl_head_forward(x, wc, bc, wl, bl, wd, bd, eps_d, eps_r,
                             matrix_rank=R, num_mc_samples=S,
                             temperature=TEMPERATURE)
    out = jax.block_until_ready(out)

    ref = hetxl_head_ref(x, wc, bc, wl, bl, wd, bd, eps_d, eps_r,
                         matrix_rank=R, temperature=TEMPERATURE)

    assert out.shape == (B, S, D), out.shape
    # Slightly looser tolerance: the classifier is algebraically fused into the
    # downstream layers (x @ (wc@wl) vs (x@wc) @ wl), a different fp32 rounding path.
    assert jnp.allclose(out, ref, atol=1e-4, rtol=1e-4), \
        float(jnp.max(jnp.abs(out - ref)))
    print("KERNEL_OK")
</pallas_src>

<mosaic_0001>
module attributes {stable_mosaic.version = 11 : i64} {
  func.func @_hetxl_kernel(%arg0: i32, %arg1: memref<8x32xf32, #tpu.memory_space<vmem>>, %arg2: memref<32x768xf32, #tpu.memory_space<vmem>>, %arg3: memref<1x768xf32, #tpu.memory_space<vmem>>, %arg4: memref<128x512xf32, #tpu.memory_space<vmem>>, %arg5: memref<8x128xf32, #tpu.memory_space<vmem>>, %arg6: memref<8x128xf32, #tpu.memory_space<vmem>>, %arg7: memref<8x128xf32, #tpu.memory_space<vmem>>) attributes {dimension_semantics = [#tpu.dimension_semantics<parallel>], iteration_bounds = array<i64: 1>, scalar_prefetch = 0 : i64, scratch_operands = 0 : i64, tpu.core_type = #tpu.core_type<tc>, window_params = [{transform_indices = @transform_0, window_bounds = array<i64: 8, 32>}, {pipeline_mode = #tpu.pipeline_mode<synchronous>, transform_indices = @transform_1, window_bounds = array<i64: 32, 768>}, {pipeline_mode = #tpu.pipeline_mode<synchronous>, transform_indices = @transform_2, window_bounds = array<i64: 1, 768>}, {pipeline_mode = #tpu.pipeline_mode<synchronous>, transform_indices = @transform_3, window_bounds = array<i64: 128, 512>}, {transform_indices = @transform_4, window_bounds = array<i64: 8, 128>}, {transform_indices = @transform_5, window_bounds = array<i64: 8, 128>}, {transform_indices = @transform_6, window_bounds = array<i64: 8, 128>}]} {
    %c0 = arith.constant 0 : index
    %c0_0 = arith.constant 0 : index
    %0 = vector.load %arg1[%c0, %c0_0] : memref<8x32xf32, #tpu.memory_space<vmem>>, vector<8x32xf32>
    %c0_1 = arith.constant 0 : index
    %c0_2 = arith.constant 0 : index
    %1 = vector.load %arg2[%c0_1, %c0_2] : memref<32x768xf32, #tpu.memory_space<vmem>>, vector<32x768xf32>
    %cst = arith.constant dense<0.000000e+00> : vector<8x768xf32>
    %2 = tpu.matmul %0, %1, %cst {dimension_numbers = #tpu.dot_dimension_numbers<[1], [0], [0], [1], [0, 0, 1, 1], [], []>} : vector<8x32xf32>, vector<32x768xf32>, vector<8x768xf32> -> vector<8x768xf32>
    %c0_3 = arith.constant 0 : index
    %c0_4 = arith.constant 0 : index
    %3 = vector.load %arg3[%c0_3, %c0_4] : memref<1x768xf32, #tpu.memory_space<vmem>>, vector<1x768xf32>
    %4 = vector.broadcast %3 : vector<1x768xf32> to vector<8x768xf32>
    %5 = arith.addf %2, %4 : vector<8x768xf32>
    %6 = vector.extract_strided_slice %5 {offsets = [0, 0], sizes = [8, 128], strides = [1, 1]} : vector<8x768xf32> to vector<8x128xf32>
    %7 = vector.extract_strided_slice %5 {offsets = [0, 128], sizes = [8, 128], strides = [1, 1]} : vector<8x768xf32> to vector<8x128xf32>
    %cst_5 = arith.constant 2.000000e+01 : f32
    %8 = vector.broadcast %cst_5 : f32 to vector<8x128xf32>
    %9 = arith.cmpf ogt, %7, %8 : vector<8x128xf32>
    %cst_6 = arith.constant 2.000000e+01 : f32
    %10 = vector.broadcast %cst_6 : f32 to vector<8x128xf32>
    %11 = arith.minimumf %7, %10 : vector<8x128xf32>
    %12 = math.exp %11 : vector<8x128xf32>
    %13 = math.log1p %12 : vector<8x128xf32>
    %14 = arith.select %9, %7, %13 : vector<8x128xi1>, vector<8x128xf32>
    %cst_7 = arith.constant 1.000000e-03 : f32
    %15 = vector.broadcast %cst_7 : f32 to vector<8x128xf32>
    %16 = arith.addf %14, %15 : vector<8x128xf32>
    %c0_8 = arith.constant 0 : index
    %c0_9 = arith.constant 0 : index
    %17 = vector.load %arg5[%c0_8, %c0_9] : memref<8x128xf32, #tpu.memory_space<vmem>>, vector<8x128xf32>
    %c0_10 = arith.constant 0 : index
    %c0_11 = arith.constant 0 : index
    %18 = vector.load %arg6[%c0_10, %c0_11] : memref<8x128xf32, #tpu.memory_space<vmem>>, vector<8x128xf32>
    %c0_12 = arith.constant 0 : index
    %c0_13 = arith.constant 0 : index
    %19 = vector.load %arg4[%c0_12, %c0_13] : memref<128x512xf32, #tpu.memory_space<vmem>>, vector<128x512xf32>
    %cst_14 = arith.constant dense<0.000000e+00> : vector<8x512xf32>
    %20 = tpu.matmul %18, %19, %cst_14 {dimension_numbers = #tpu.dot_dimension_numbers<[1], [0], [0], [1], [0, 0, 1, 1], [], []>} : vector<8x128xf32>, vector<128x512xf32>, vector<8x512xf32> -> vector<8x512xf32>
    %21 = arith.mulf %16, %17 : vector<8x128xf32>
    %22 = arith.addf %6, %21 : vector<8x128xf32>
    %23 = vector.extract_strided_slice %5 {offsets = [0, 256], sizes = [8, 128], strides = [1, 1]} : vector<8x768xf32> to vector<8x128xf32>
    %24 = vector.extract_strided_slice %20 {offsets = [0, 0], sizes = [8, 128], strides = [1, 1]} : vector<8x512xf32> to vector<8x128xf32>
    %25 = arith.mulf %23, %24 : vector<8x128xf32>
    %26 = arith.addf %22, %25 : vector<8x128xf32>
    %27 = vector.extract_strided_slice %5 {offsets = [0, 384], sizes = [8, 128], strides = [1, 1]} : vector<8x768xf32> to vector<8x128xf32>
    %28 = vector.extract_strided_slice %20 {offsets = [0, 128], sizes = [8, 128], strides = [1, 1]} : vector<8x512xf32> to vector<8x128xf32>
    %29 = arith.mulf %27, %28 : vector<8x128xf32>
    %30 = arith.addf %26, %29 : vector<8x128xf32>
    %31 = vector.extract_strided_slice %5 {offsets = [0, 512], sizes = [8, 128], strides = [1, 1]} : vector<8x768xf32> to vector<8x128xf32>
    %32 = vector.extract_strided_slice %20 {offsets = [0, 256], sizes = [8, 128], strides = [1, 1]} : vector<8x512xf32> to vector<8x128xf32>
    %33 = arith.mulf %31, %32 : vector<8x128xf32>
    %34 = arith.addf %30, %33 : vector<8x128xf32>
    %35 = vector.extract_strided_slice %5 {offsets = [0, 640], sizes = [8, 128], strides = [1, 1]} : vector<8x768xf32> to vector<8x128xf32>
    %36 = vector.extract_strided_slice %20 {offsets = [0, 384], sizes = [8, 128], strides = [1, 1]} : vector<8x512xf32> to vector<8x128xf32>
    %37 = arith.mulf %35, %36 : vector<8x128xf32>
    %38 = arith.addf %34, %37 : vector<8x128xf32>
    %cst_15 = arith.constant 0.666666686 : f32
    %39 = vector.broadcast %cst_15 : f32 to vector<8x128xf32>
    %40 = arith.mulf %38, %39 : vector<8x128xf32>
    %c0_16 = arith.constant 0 : index
    %c0_17 = arith.constant 0 : index
    %41 = vector.load %arg7[%c0_16, %c0_17] : memref<8x128xf32, #tpu.memory_space<vmem>>, vector<8x128xf32>
    tpu.vector_store %arg7[%c0_16, %c0_17], %40 {strides = array<i32>} : memref<8x128xf32, #tpu.memory_space<vmem>>, vector<8x128xf32>,
    return
  }
  func.func @transform_0(%arg0: i32) -> (i32, i32) {
    %c0_i32 = arith.constant 0 : i32
    %c0_i32_0 = arith.constant 0 : i32
    return %arg0, %c0_i32 : i32, i32
  }
  func.func @transform_1(%arg0: i32) -> (i32, i32) {
    %c0_i32 = arith.constant 0 : i32
    %c0_i32_0 = arith.constant 0 : i32
    %c0_i32_1 = arith.constant 0 : i32
    return %c0_i32, %c0_i32_0 : i32, i32
  }
  func.func @transform_2(%arg0: i32) -> (i32, i32) {
    %c0_i32 = arith.constant 0 : i32
    %c0_i32_0 = arith.constant 0 : i32
    %c0_i32_1 = arith.constant 0 : i32
    return %c0_i32, %c0_i32_0 : i32, i32
  }
  func.func @transform_3(%arg0: i32) -> (i32, i32) {
    %c0_i32 = arith.constant 0 : i32
    %c0_i32_0 = arith.constant 0 : i32
    %c0_i32_1 = arith.constant 0 : i32
    return %c0_i32, %c0_i32_0 : i32, i32
  }
  func.func @transform_4(%arg0: i32) -> (i32, i32) {
    %c0_i32 = arith.constant 0 : i32
    %c0_i32_0 = arith.constant 0 : i32
    return %arg0, %c0_i32 : i32, i32
  }
  func.func @transform_5(%arg0: i32) -> (i32, i32) {
    %c0_i32 = arith.constant 0 : i32
    %c0_i32_0 = arith.constant 0 : i32
    return %arg0, %c0_i32 : i32, i32
  }
  func.func @transform_6(%arg0: i32) -> (i32, i32) {
    %c0_i32 = arith.constant 0 : i32
    %c0_i32_0 = arith.constant 0 : i32
    return %arg0, %c0_i32 : i32, i32
  }
}

</mosaic_0001>

<llo_original>
// kernel: tpu_custom_call.1
$region0: #{tpu_custom_call.1}
  #allocation0 [shape = 'u32[]', space=smem, size = 0x4, offset = 0x4, fixed_abs, tag = 'smem constant byte address 0x4 - core index']
  #allocation1 [shape = 'u32[144,128]{1,0:T(1,128)}', space=vmem, size = 0x12000, scoped, tag = 'internal scratch']
  %s0 = inlined_call_operand.hbm [shape: f32[8,32], index: 0, kind: input, shape index: {}]
  %s1 = inlined_call_operand.hbm [shape: f32[32,768], index: 1, kind: input, shape index: {}]
  %s2 = inlined_call_operand.hbm [shape: f32[1,768], index: 2, kind: input, shape index: {}]
  %s3 = inlined_call_operand.hbm [shape: f32[128,512], index: 3, kind: input, shape index: {}]
  %s4 = inlined_call_operand.vmem [shape: f32[8,128], index: 4, kind: input, shape index: {}]
  %s5 = inlined_call_operand.vmem [shape: f32[8,128], index: 5, kind: input, shape index: {}]
  %s6 = inlined_call_operand.hbm [shape: f32[8,128], index: 6, kind: output, shape index: {}]
  %s7 = sld [smem:[#allocation0]]
  $region50: #{tpu_custom_call.1} parent=0
    _
  %s9 = ssub.s32 1, %s7
  %s10 = scalar_select 0, %s9, %s7
  $region1: #{tpu_custom_call.1} parent=0
    #allocation2 [shape = 'u8[4096]{0}', space=vmem, size = 0x1000, scoped, tag = 'input window, operand 0, single buffered']
    #allocation3 [shape = 's32[1]{0}', space=sflag, size = 0x4, scoped, tag = 'scoped memory for tpu_custom_call.1']
    #allocation4 [shape = 's32[1]{0}', space=sflag, size = 0x4, scoped, tag = 'scoped memory for tpu_custom_call.1']
    #allocation5 [shape = 'u8[98304]{0}', space=vmem, size = 0x18000, scoped, tag = 'input window, operand 1, single buffered']
    #allocation6 [shape = 's32[1]{0}', space=sflag, size = 0x4, scoped, tag = 'scoped memory for tpu_custom_call.1']
    #allocation7 [shape = 'u8[3072]{0}', space=vmem, size = 0xc00, scoped, tag = 'input window, operand 2, single buffered']
    #allocation8 [shape = 'u8[262144]{0}', space=vmem, size = 0x40000, scoped, tag = 'input window, operand 3, single buffered']
    #allocation9 [shape = 's32[1]{0}', space=sflag, size = 0x4, scoped, tag = 'scoped memory for tpu_custom_call.1']
    #allocation10 [shape = 'u8[4096]{0}', space=vmem, size = 0x1000, scoped, tag = 'output window, operand 0, single buffered']
    %11 = vsyncpa [#allocation3], 0
    %12 = vsyncpa [#allocation6], 0
    %13 = vsyncpa [#allocation9], 0
    %14 = vsyncpa [#allocation4], 0
    // Predicated region
    $region2: #{tpu_custom_call.1} parent=1 // pred_check
      _
    $region3: #{tpu_custom_call.1} parent=1 // pred_check_branch
      %16 = sbr.rel (0) target = $region5
    $region4: #{tpu_custom_call.1} parent=1 // pred_region
      %s18 = ssub.s32 128, 128
      %19 = vsyncadd [#allocation3], %s18
      %s21 = sshll.u32 [#allocation2], 4
      %s22 = int_to_ptr.vmem [resolvable:$true] %s21
      %24 = dma.hbm_to_vmem [thread:$0]  %s0, 128, %s22, [#allocation3]
    $region5: #{tpu_custom_call.1} parent=1 // pred_fallthru
      _
    // Predicated region
    $region6: #{tpu_custom_call.1} parent=1 // pred_check
      _
    $region7: #{tpu_custom_call.1} parent=1 // pred_check_branch
      %26 = sbr.rel (0) target = $region9
    $region8: #{tpu_custom_call.1} parent=1 // pred_region
      %s28 = ssub.s32 3072, 3072
      %29 = vsyncadd [#allocation6], %s28
      %s30 = sshll.u32 [#allocation5], 4
      %s31 = int_to_ptr.vmem [resolvable:$true] %s30
      %36 = dma.hbm_to_vmem [thread:$0]  %s1, 3072, %s31, [#allocation6], 768, 768, 48
    $region9: #{tpu_custom_call.1} parent=1 // pred_fallthru
      _
    // Predicated region
    $region10: #{tpu_custom_call.1} parent=1 // pred_check
      _
    $region11: #{tpu_custom_call.1} parent=1 // pred_check_branch
      %38 = sbr.rel (0) target = $region13
    $region12: #{tpu_custom_call.1} parent=1 // pred_region
      %s40 = ssub.s32 96, 96
      %41 = vsyncadd [#allocation6], %s40
      %s43 = sshll.u32 [#allocation7], 4
      %s44 = int_to_ptr.vmem [resolvable:$true] %s43
      %46 = dma.hbm_to_vmem [thread:$0]  %s2, 96, %s44, [#allocation6]
    $region13: #{tpu_custom_call.1} parent=1 // pred_fallthru
      _
    // Predicated region
    $region14: #{tpu_custom_call.1} parent=1 // pred_check
      _
    $region15: #{tpu_custom_call.1} parent=1 // pred_check_branch
      %48 = sbr.rel (0) target = $region17
    $region16: #{tpu_custom_call.1} parent=1 // pred_region
      %s50 = ssub.s32 8192, 8192
      %51 = vsyncadd [#allocation9], %s50
      %s52 = sshll.u32 [#allocation8], 4
      %s53 = int_to_ptr.vmem [resolvable:$true] %s52
      %58 = dma.hbm_to_vmem [thread:$0]  %s3, 8192, %s53, [#allocation9], 512, 512, 32
    $region17: #{tpu_custom_call.1} parent=1 // pred_fallthru
      _
    // Predicated region
    $region18: #{tpu_custom_call.1} parent=1 // pred_check
      _
    $region19: #{tpu_custom_call.1} parent=1 // pred_check_branch
      %60 = sbr.rel (0) target = $region21
    $region20: #{tpu_custom_call.1} parent=1 // pred_region
      _
    $region21: #{tpu_custom_call.1} parent=1 // pred_fallthru
      _
    // Predicated region
    $region22: #{tpu_custom_call.1} parent=1 // pred_check
      _
    $region23: #{tpu_custom_call.1} parent=1 // pred_check_branch
      %62 = sbr.rel (0) target = $region25
    $region24: #{tpu_custom_call.1} parent=1 // pred_region
      _
    $region25: #{tpu_custom_call.1} parent=1 // pred_fallthru
      _
    // Predicated region
    $region26: #{tpu_custom_call.1} parent=1 // pred_check
      _
    $region27: #{tpu_custom_call.1} parent=1 // pred_check_branch
      %64 = sbr.rel (0) target = $region29
    $region28: #{tpu_custom_call.1} parent=1 // pred_region
      %65 = dma.done [#allocation3], 128
    $region29: #{tpu_custom_call.1} parent=1 // pred_fallthru
      _
    // Predicated region
    $region30: #{tpu_custom_call.1} parent=1 // pred_check
      _
    $region31: #{tpu_custom_call.1} parent=1 // pred_check_branch
      %67 = sbr.rel (0) target = $region33
    $region32: #{tpu_custom_call.1} parent=1 // pred_region
      %68 = dma.done [#allocation6], 3072
    $region33: #{tpu_custom_call.1} parent=1 // pred_fallthru
      _
    // Predicated region
    $region34: #{tpu_custom_call.1} parent=1 // pred_check
      _
    $region35: #{tpu_custom_call.1} parent=1 // pred_check_branch
      %70 = sbr.rel (0) target = $region37
    $region36: #{tpu_custom_call.1} parent=1 // pred_region
      %71 = dma.done [#allocation6], 96
    $region37: #{tpu_custom_call.1} parent=1 // pred_fallthru
      _
    // Predicated region
    $region38: #{tpu_custom_call.1} parent=1 // pred_check
      _
    $region39: #{tpu_custom_call.1} parent=1 // pred_check_branch
      %73 = sbr.rel (0) target = $region41
    $region40: #{tpu_custom_call.1} parent=1 // pred_region
      %74 = dma.done [#allocation9], 8192
    $region41: #{tpu_custom_call.1} parent=1 // pred_fallthru
      _
    %v75 = vld [vmem:[#allocation2] sm:$0xff]
    %v76 = vld [vmem:[#allocation5] sm:$0xff]
    %v77 = vld [vmem:[#allocation5 + $0x8] sm:$0xff]
    %v78 = vld [vmem:[#allocation5 + $0x10] sm:$0xff]
    %v79 = vld [vmem:[#allocation5 + $0x18] sm:$0xff]
    %v80 = vld [vmem:[#allocation5 + $0x20] sm:$0xff]
    %v81 = vld [vmem:[#allocation5 + $0x28] sm:$0xff]
    %v82 = vld [vmem:[#allocation5 + $0x30] sm:$0xff]
    %v83 = vld [vmem:[#allocation5 + $0x38] sm:$0xff]
    %v84 = vld [vmem:[#allocation5 + $0x40] sm:$0xff]
    %v85 = vld [vmem:[#allocation5 + $0x48] sm:$0xff]
    %v86 = vld [vmem:[#allocation5 + $0x50] sm:$0xff]
    %v87 = vld [vmem:[#allocation5 + $0x58] sm:$0xff]
    %v88 = vld [vmem:[#allocation5 + $0x60] sm:$0xff]
    %v89 = vld [vmem:[#allocation5 + $0x68] sm:$0xff]
    %v90 = vld [vmem:[#allocation5 + $0x70] sm:$0xff]
    %v91 = vld [vmem:[#allocation5 + $0x78] sm:$0xff]
    %v92 = vld [vmem:[#allocation5 + $0x80] sm:$0xff]
    %v93 = vld [vmem:[#allocation5 + $0x88] sm:$0xff]
    %v94 = vld [vmem:[#allocation5 + $0x90] sm:$0xff]
    %v95 = vld [vmem:[#allocation5 + $0x98] sm:$0xff]
    %v96 = vld [vmem:[#allocation5 + $0xa0] sm:$0xff]
    %v97 = vld [vmem:[#allocation5 + $0xa8] sm:$0xff]
    %v98 = vld [vmem:[#allocation5 + $0xb0] sm:$0xff]
    %v99 = vld [vmem:[#allocation5 + $0xb8] sm:$0xff]
    %v100 = vld [vmem:[#allocation7] sm:$0x3f]
    %v102 = vlaneseq
    %v103 = vshrl.u32 %v102, 7
    %v104 = vsub.s32 0, %v103
    %v105 = vrot.slane %v100, %v104
    %v106 = vlaneseq
    %v107 = vshrl.u32 %v106, 7
    %v108 = vsub.s32 1, %v107
    %v109 = vrot.slane %v100, %v108
    %v110 = vlaneseq
    %v111 = vshrl.u32 %v110, 7
    %v112 = vsub.s32 2, %v111
    %v113 = vrot.slane %v100, %v112
    %v114 = vlaneseq
    %v115 = vshrl.u32 %v114, 7
    %v116 = vsub.s32 3, %v115
    %v117 = vrot.slane %v100, %v116
    %v118 = vlaneseq
    %v119 = vshrl.u32 %v118, 7
    %v120 = vsub.s32 4, %v119
    %v121 = vrot.slane %v100, %v120
    %v122 = vlaneseq
    %v123 = vshrl.u32 %v122, 7
    %v124 = vsub.s32 5, %v123
    %v125 = vrot.slane %v100, %v124
    %vm132 = vcmask 261120
    %v134 = vsel %vm132, %v75, 0
    %136 = vmatprep.subr.mxu0 %v77
    %137 = vmatpush1.msra.mxu0 %v76
    %138 = vmatprep.subr.mxu0 %v83
    %139 = vmatpush1.msra.mxu0 %v82
    %140 = vmatprep.subr.mxu0 %v89
    %141 = vmatpush1.msra.mxu0 %v88
    %142 = vmatprep.subr.mxu0 %v95
    %143 = vmatpush1.msra.mxu0 %v94
    %144 = vmatprep.subr.mxu0 0.0
    %145 = vmatpush1.msra.mxu0 0.0
    %146 = vmatprep.subr.mxu0 0.0
    %147 = vmatpush1.msra.mxu0 0.0
    %148 = vmatprep.subr.mxu0 0.0
    %149 = vmatpush1.msra.mxu0 0.0
    %150 = vmatprep.subr.mxu0 0.0
    %151 = vmatpush1.msra.mxu0 0.0
    %152 = vmatprep.subr.mxu0 0.0
    %153 = vmatpush1.msra.mxu0 0.0
    %154 = vmatprep.subr.mxu0 0.0
    %155 = vmatpush1.msra.mxu0 0.0
    %156 = vmatprep.subr.mxu0 0.0
    %157 = vmatpush1.msra.mxu0 0.0
    %158 = vmatprep.subr.mxu0 0.0
    %159 = vmatpush1.msra.mxu0 0.0
    %160 = vmatprep.subr.mxu0 0.0
    %161 = vmatpush1.msra.mxu0 0.0
    %162 = vmatprep.subr.mxu0 0.0
    %163 = vmatpush1.msra.mxu0 0.0
    %164 = vmatprep.subr.mxu0 0.0
    %165 = vmatpush1.msra.mxu0 0.0
    %166 = vmatprep.subr.mxu0 0.0
    %167 = vmatpush1.msra.mxu0 0.0
    %168 = vmatprep.subr.mxu0 0.0
    %169 = vmatpush1.msra.mxu0 0.0
    %170 = vmatprep.subr.mxu0 0.0
    %171 = vmatpush1.msra.mxu0 0.0
    %172 = vmatprep.subr.mxu0 0.0
    %173 = vmatpush1.msra.mxu0 0.0
    %174 = vmatprep.subr.mxu0 0.0
    %175 = vmatpush1.msra.mxu0 0.0
    %176 = vmatprep.subr.mxu0 0.0
    %177 = vmatpush1.msra.mxu0 0.0
    %178 = vmatprep.subr.mxu0 0.0
    %179 = vmatpush1.msra.mxu0 0.0
    %180 = vmatprep.subr.mxu0 0.0
    %181 = vmatpush1.msra.mxu0 0.0
    %182 = vmatprep.subr.mxu0 0.0
    %183 = vmatpush1.msra.mxu0 0.0
    %184 = vmatprep.subr.mxu0 0.0
    %185 = vmatpush1.msra.mxu0 0.0
    %186 = vmatprep.subr.mxu0 0.0
    %187 = vmatpush1.msra.mxu0 0.0
    %188 = vmatprep.subr.mxu0 0.0
    %189 = vmatpush1.msra.mxu0 0.0
    %190 = vmatprep.subr.mxu0 0.0
    %191 = vmatpush1.msra.mxu0 0.0
    %192 = vmatprep.subr.mxu0 0.0
    %193 = vmatpush1.msra.mxu0 0.0
    %194 = vmatprep.subr.mxu0 0.0
    %195 = vmatpush1.msra.mxu0 0.0
    %196 = vmatprep.subr.mxu0 0.0
    %197 = vmatpush1.msra.mxu0 0.0
    %198 = vmatprep.subr.mxu0 0.0
    %199 = vmatpush1.msra.mxu0 0.0
    %200 = vmatprep.mubr.f32.mxu0 0.0
    %201 = vmatmul.mubr.f32.gmra.mrb[0].mxu0 %v134
    %v202 = vpop.f32.mrb[0].mxu0
    %v203 = vadd.f32 %v105, %v202
    %v204 = vpop.f32.mrb[0].mxu0
    %v205 = vadd.f32 %v109, %v204
    %206 = vdwg.mxu0
    %207 = vmatprep.subr.mxu0 %v79
    %208 = vmatpush1.msra.mxu0 %v78
    %209 = vmatprep.subr.mxu0 %v85
    %210 = vmatpush1.msra.mxu0 %v84
    %211 = vmatprep.subr.mxu0 %v91
    %212 = vmatpush1.msra.mxu0 %v90
    %213 = vmatprep.subr.mxu0 %v97
    %214 = vmatpush1.msra.mxu0 %v96
    %215 = vmatprep.subr.mxu0 0.0
    %216 = vmatpush1.msra.mxu0 0.0
    %217 = vmatprep.subr.mxu0 0.0
    %218 = vmatpush1.msra.mxu0 0.0
    %219 = vmatprep.subr.mxu0 0.0
    %220 = vmatpush1.msra.mxu0 0.0
    %221 = vmatprep.subr.mxu0 0.0
    %222 = vmatpush1.msra.mxu0 0.0
    %223 = vmatprep.subr.mxu0 0.0
    %224 = vmatpush1.msra.mxu0 0.0
    %225 = vmatprep.subr.mxu0 0.0
    %226 = vmatpush1.msra.mxu0 0.0
    %227 = vmatprep.subr.mxu0 0.0
    %228 = vmatpush1.msra.mxu0 0.0
    %229 = vmatprep.subr.mxu0 0.0
    %230 = vmatpush1.msra.mxu0 0.0
    %231 = vmatprep.subr.mxu0 0.0
    %232 = vmatpush1.msra.mxu0 0.0
    %233 = vmatprep.subr.mxu0 0.0
    %234 = vmatpush1.msra.mxu0 0.0
    %235 = vmatprep.subr.mxu0 0.0
    %236 = vmatpush1.msra.mxu0 0.0
    %237 = vmatprep.subr.mxu0 0.0
    %238 = vmatpush1.msra.mxu0 0.0
    %239 = vmatprep.subr.mxu0 0.0
    %240 = vmatpush1.msra.mxu0 0.0
    %241 = vmatprep.subr.mxu0 0.0
    %242 = vmatpush1.msra.mxu0 0.0
    %243 = vmatprep.subr.mxu0 0.0
    %244 = vmatpush1.msra.mxu0 0.0
    %245 = vmatprep.subr.mxu0 0.0
    %246 = vmatpush1.msra.mxu0 0.0
    %247 = vmatprep.subr.mxu0 0.0
    %248 = vmatpush1.msra.mxu0 0.0
    %249 = vmatprep.subr.mxu0 0.0
    %250 = vmatpush1.msra.mxu0 0.0
    %251 = vmatprep.subr.mxu0 0.0
    %252 = vmatpush1.msra.mxu0 0.0
    %253 = vmatprep.subr.mxu0 0.0
    %254 = vmatpush1.msra.mxu0 0.0
    %255 = vmatprep.subr.mxu0 0.0
    %256 = vmatpush1.msra.mxu0 0.0
    %257 = vmatprep.subr.mxu0 0.0
    %258 = vmatpush1.msra.mxu0 0.0
    %259 = vmatprep.subr.mxu0 0.0
    %260 = vmatpush1.msra.mxu0 0.0
    %261 = vmatprep.subr.mxu0 0.0
    %262 = vmatpush1.msra.mxu0 0.0
    %263 = vmatprep.subr.mxu0 0.0
    %264 = vmatpush1.msra.mxu0 0.0
    %265 = vmatprep.subr.mxu0 0.0
    %266 = vmatpush1.msra.mxu0 0.0
    %267 = vmatprep.subr.mxu0 0.0
    %268 = vmatpush1.msra.mxu0 0.0
    %269 = vmatprep.subr.mxu0 0.0
    %270 = vmatpush1.msra.mxu0 0.0
    %271 = vmatprep.mubr.f32.mxu0 0.0
    %272 = vmatmul.mubr.f32.gmra.mrb[0].mxu0 %v134
    %v273 = vpop.f32.mrb[0].mxu0
    %v274 = vadd.f32 %v113, %v273
    %v275 = vpop.f32.mrb[0].mxu0
    %v276 = vadd.f32 %v117, %v275
    %277 = vdwg.mxu0
    %278 = vmatprep.subr.mxu0 %v81
    %279 = vmatpush1.msra.mxu0 %v80
    %280 = vmatprep.subr.mxu0 %v87
    %281 = vmatpush1.msra.mxu0 %v86
    %282 = vmatprep.subr.mxu0 %v93
    %283 = vmatpush1.msra.mxu0 %v92
    %284 = vmatprep.subr.mxu0 %v99
    %285 = vmatpush1.msra.mxu0 %v98
    %286 = vmatprep.subr.mxu0 0.0
    %287 = vmatpush1.msra.mxu0 0.0
    %288 = vmatprep.subr.mxu0 0.0
    %289 = vmatpush1.msra.mxu0 0.0
    %290 = vmatprep.subr.mxu0 0.0
    %291 = vmatpush1.msra.mxu0 0.0
    %292 = vmatprep.subr.mxu0 0.0
    %293 = vmatpush1.msra.mxu0 0.0
    %294 = vmatprep.subr.mxu0 0.0
    %295 = vmatpush1.msra.mxu0 0.0
    %296 = vmatprep.subr.mxu0 0.0
    %297 = vmatpush1.msra.mxu0 0.0
    %298 = vmatprep.subr.mxu0 0.0
    %299 = vmatpush1.msra.mxu0 0.0
    %300 = vmatprep.subr.mxu0 0.0
    %301 = vmatpush1.msra.mxu0 0.0
    %302 = vmatprep.subr.mxu0 0.0
    %303 = vmatpush1.msra.mxu0 0.0
    %304 = vmatprep.subr.mxu0 0.0
    %305 = vmatpush1.msra.mxu0 0.0
    %306 = vmatprep.subr.mxu0 0.0
    %307 = vmatpush1.msra.mxu0 0.0
    %308 = vmatprep.subr.mxu0 0.0
    %309 = vmatpush1.msra.mxu0 0.0
    %310 = vmatprep.subr.mxu0 0.0
    %311 = vmatpush1.msra.mxu0 0.0
    %312 = vmatprep.subr.mxu0 0.0
    %313 = vmatpush1.msra.mxu0 0.0
    %314 = vmatprep.subr.mxu0 0.0
    %315 = vmatpush1.msra.mxu0 0.0
    %316 = vmatprep.subr.mxu0 0.0
    %317 = vmatpush1.msra.mxu0 0.0
    %318 = vmatprep.subr.mxu0 0.0
    %319 = vmatpush1.msra.mxu0 0.0
    %320 = vmatprep.subr.mxu0 0.0
    %321 = vmatpush1.msra.mxu0 0.0
    %322 = vmatprep.subr.mxu0 0.0
    %323 = vmatpush1.msra.mxu0 0.0
    %324 = vmatprep.subr.mxu0 0.0
    %325 = vmatpush1.msra.mxu0 0.0
    %326 = vmatprep.subr.mxu0 0.0
    %327 = vmatpush1.msra.mxu0 0.0
    %328 = vmatprep.subr.mxu0 0.0
    %329 = vmatpush1.msra.mxu0 0.0
    %330 = vmatprep.subr.mxu0 0.0
    %331 = vmatpush1.msra.mxu0 0.0
    %332 = vmatprep.subr.mxu0 0.0
    %333 = vmatpush1.msra.mxu0 0.0
    %334 = vmatprep.subr.mxu0 0.0
    %335 = vmatpush1.msra.mxu0 0.0
    %336 = vmatprep.subr.mxu0 0.0
    %337 = vmatpush1.msra.mxu0 0.0
    %338 = vmatprep.subr.mxu0 0.0
    %339 = vmatpush1.msra.mxu0 0.0
    %340 = vmatprep.subr.mxu0 0.0
    %341 = vmatpush1.msra.mxu0 0.0
    %342 = vmatprep.mubr.f32.mxu0 0.0
    %343 = vmatmul.mubr.f32.gmra.mrb[0].mxu0 %v134
    %v344 = vpop.f32.mrb[0].mxu0
    %v345 = vadd.f32 %v121, %v344
    %v346 = vpop.f32.mrb[0].mxu0
    %v347 = vadd.f32 %v125, %v346
    %348 = vdwg.mxu0
    %vm349 = vcmp.gt.f32.partialorder %v205, 20.0
    %v350 = vmin.f32 %v205, 20.0
    %v351 = vmul.f32 %v350, 1.442695
    %v352 = vpow.pop %v351
    %v353 = vadd.f32 %v352, 1.0
    %v354 = vlog2.pop %v353
    %v355 = vmul.f32 %v354, 0.6931472
    %v356 = vmul.f32 -0.5, %v352
    %v357 = vadd.f32 %v356, 1.0
    %v358 = vmul.f32 %v357, %v352
    %v359 = vand.u32 2147483647, %v352
    %vm360 = vcmp.lt.f32.partialorder %v359, 0.0004427343
    %v361 = vsel %vm360, %v358, %v355
    %v362 = vsel %vm349, %v205, %v361
    %v363 = vadd.f32 %v362, 0.001
    %v364 = vld [vmem:[%s4] sm:$0xff]
    %v365 = vld [vmem:[%s5] sm:$0xff]
    %v366 = vld [vmem:[#allocation8] sm:$0xff]
    %v367 = vld [vmem:[#allocation8 + $0x8] sm:$0xff]
    %v368 = vld [vmem:[#allocation8 + $0x10] sm:$0xff]
    %v369 = vld [vmem:[#allocation8 + $0x18] sm:$0xff]
    %v370 = vld [vmem:[#allocation8 + $0x20] sm:$0xff]
    %v371 = vld [vmem:[#allocation8 + $0x28] sm:$0xff]
    %v372 = vld [vmem:[#allocation8 + $0x30] sm:$0xff]
    %v373 = vld [vmem:[#allocation8 + $0x38] sm:$0xff]
    %v374 = vld [vmem:[#allocation8 + $0x40] sm:$0xff]
    %v375 = vld [vmem:[#allocation8 + $0x48] sm:$0xff]
    %v376 = vld [vmem:[#allocation8 + $0x50] sm:$0xff]
    %v377 = vld [vmem:[#allocation8 + $0x58] sm:$0xff]
    %v378 = vld [vmem:[#allocation8 + $0x60] sm:$0xff]
    %v379 = vld [vmem:[#allocation8 + $0x68] sm:$0xff]
    %v380 = vld [vmem:[#allocation8 + $0x70] sm:$0xff]
    %v381 = vld [vmem:[#allocation8 + $0x78] sm:$0xff]
    %v382 = vld [vmem:[#allocation8 + $0x80] sm:$0xff]
    %v383 = vld [vmem:[#allocation8 + $0x88] sm:$0xff]
    %v384 = vld [vmem:[#allocation8 + $0x90] sm:$0xff]
    %v385 = vld [vmem:[#allocation8 + $0x98] sm:$0xff]
    %v386 = vld [vmem:[#allocation8 + $0xa0] sm:$0xff]
    %v387 = vld [vmem:[#allocation8 + $0xa8] sm:$0xff]
    %v388 = vld [vmem:[#allocation8 + $0xb0] sm:$0xff]
    %v389 = vld [vmem:[#allocation8 + $0xb8] sm:$0xff]
    %v390 = vld [vmem:[#allocation8 + $0xc0] sm:$0xff]
    %v391 = vld [vmem:[#allocation8 + $0xc8] sm:$0xff]
    %v392 = vld [vmem:[#allocation8 + $0xd0] sm:$0xff]
    %v393 = vld [vmem:[#allocation8 + $0xd8] sm:$0xff]
    %v394 = vld [vmem:[#allocation8 + $0xe0] sm:$0xff]
    %v395 = vld [vmem:[#allocation8 + $0xe8] sm:$0xff]
    %v396 = vld [vmem:[#allocation8 + $0xf0] sm:$0xff]
    %v397 = vld [vmem:[#allocation8 + $0xf8] sm:$0xff]
    %v398 = vld [vmem:[#allocation8 + $0x100] sm:$0xff]
    %v399 = vld [vmem:[#allocation8 + $0x108] sm:$0xff]
    %v400 = vld [vmem:[#allocation8 + $0x110] sm:$0xff]
    %v401 = vld [vmem:[#allocation8 + $0x118] sm:$0xff]
    %v402 = vld [vmem:[#allocation8 + $0x120] sm:$0xff]
    %v403 = vld [vmem:[#allocation8 + $0x128] sm:$0xff]
    %v404 = vld [vmem:[#allocation8 + $0x130] sm:$0xff]
    %v405 = vld [vmem:[#allocation8 + $0x138] sm:$0xff]
    %v406 = vld [vmem:[#allocation8 + $0x140] sm:$0xff]
    %v407 = vld [vmem:[#allocation8 + $0x148] sm:$0xff]
    %v408 = vld [vmem:[#allocation8 + $0x150] sm:$0xff]
    %v409 = vld [vmem:[#allocation8 + $0x158] sm:$0xff]
    %v410 = vld [vmem:[#allocation8 + $0x160] sm:$0xff]
    %v411 = vld [vmem:[#allocation8 + $0x168] sm:$0xff]
    %v412 = vld [vmem:[#allocation8 + $0x170] sm:$0xff]
    %v413 = vld [vmem:[#allocation8 + $0x178] sm:$0xff]
    %v414 = vld [vmem:[#allocation8 + $0x180] sm:$0xff]
    %v415 = vld [vmem:[#allocation8 + $0x188] sm:$0xff]
    %v416 = vld [vmem:[#allocation8 + $0x190] sm:$0xff]
    %v417 = vld [vmem:[#allocation8 + $0x198] sm:$0xff]
    %v418 = vld [vmem:[#allocation8 + $0x1a0] sm:$0xff]
    %v419 = vld [vmem:[#allocation8 + $0x1a8] sm:$0xff]
    %v420 = vld [vmem:[#allocation8 + $0x1b0] sm:$0xff]
    %v421 = vld [vmem:[#allocation8 + $0x1b8] sm:$0xff]
    %v422 = vld [vmem:[#allocation8 + $0x1c0] sm:$0xff]
    %v423 = vld [vmem:[#allocation8 + $0x1c8] sm:$0xff]
    %v424 = vld [vmem:[#allocation8 + $0x1d0] sm:$0xff]
    %v425 = vld [vmem:[#allocation8 + $0x1d8] sm:$0xff]
    %v426 = vld [vmem:[#allocation8 + $0x1e0] sm:$0xff]
    %v427 = vld [vmem:[#allocation8 + $0x1e8] sm:$0xff]
    %v428 = vld [vmem:[#allocation8 + $0x1f0] sm:$0xff]
    %v429 = vld [vmem:[#allocation8 + $0x1f8] sm:$0xff]
    %430 = vmatprep.subr.mxu0 %v367
    %431 = vmatpush1.msra.mxu0 %v366
    %432 = vmatprep.subr.mxu0 %v371
    %433 = vmatpush1.msra.mxu0 %v370
    %434 = vmatprep.subr.mxu0 %v375
    %435 = vmatpush1.msra.mxu0 %v374
    %436 = vmatprep.subr.mxu0 %v379
    %437 = vmatpush1.msra.mxu0 %v378
    %438 = vmatprep.subr.mxu0 %v383
    %439 = vmatpush1.msra.mxu0 %v382
    %440 = vmatprep.subr.mxu0 %v387
    %441 = vmatpush1.msra.mxu0 %v386
    %442 = vmatprep.subr.mxu0 %v391
    %443 = vmatpush1.msra.mxu0 %v390
    %444 = vmatprep.subr.mxu0 %v395
    %445 = vmatpush1.msra.mxu0 %v394
    %446 = vmatprep.subr.mxu0 %v399
    %447 = vmatpush1.msra.mxu0 %v398
    %448 = vmatprep.subr.mxu0 %v403
    %449 = vmatpush1.msra.mxu0 %v402
    %450 = vmatprep.subr.mxu0 %v407
    %451 = vmatpush1.msra.mxu0 %v406
    %452 = vmatprep.subr.mxu0 %v411
    %453 = vmatpush1.msra.mxu0 %v410
    %454 = vmatprep.subr.mxu0 %v415
    %455 = vmatpush1.msra.mxu0 %v414
    %456 = vmatprep.subr.mxu0 %v419
    %457 = vmatpush1.msra.mxu0 %v418
    %458 = vmatprep.subr.mxu0 %v423
    %459 = vmatpush1.msra.mxu0 %v422
    %460 = vmatprep.subr.mxu0 %v427
    %461 = vmatpush1.msra.mxu0 %v426
    %462 = vmatprep.subr.mxu0 0.0
    %463 = vmatpush1.msra.mxu0 0.0
    %464 = vmatprep.subr.mxu0 0.0
    %465 = vmatpush1.msra.mxu0 0.0
    %466 = vmatprep.subr.mxu0 0.0
    %467 = vmatpush1.msra.mxu0 0.0
    %468 = vmatprep.subr.mxu0 0.0
    %469 = vmatpush1.msra.mxu0 0.0
    %470 = vmatprep.subr.mxu0 0.0
    %471 = vmatpush1.msra.mxu0 0.0
    %472 = vmatprep.subr.mxu0 0.0
    %473 = vmatpush1.msra.mxu0 0.0
    %474 = vmatprep.subr.mxu0 0.0
    %475 = vmatpush1.msra.mxu0 0.0
    %476 = vmatprep.subr.mxu0 0.0
    %477 = vmatpush1.msra.mxu0 0.0
    %478 = vmatprep.subr.mxu0 0.0
    %479 = vmatpush1.msra.mxu0 0.0
    %480 = vmatprep.subr.mxu0 0.0
    %481 = vmatpush1.msra.mxu0 0.0
    %482 = vmatprep.subr.mxu0 0.0
    %483 = vmatpush1.msra.mxu0 0.0
    %484 = vmatprep.subr.mxu0 0.0
    %485 = vmatpush1.msra.mxu0 0.0
    %486 = vmatprep.subr.mxu0 0.0
    %487 = vmatpush1.msra.mxu0 0.0
    %488 = vmatprep.subr.mxu0 0.0
    %489 = vmatpush1.msra.mxu0 0.0
    %490 = vmatprep.subr.mxu0 0.0
    %491 = vmatpush1.msra.mxu0 0.0
    %492 = vmatprep.subr.mxu0 0.0
    %493 = vmatpush1.msra.mxu0 0.0
    %494 = vmatprep.mubr.f32.mxu0 0.0
    %495 = vmatmul.mubr.f32.gmra.mrb[0].mxu0 %v365
    %v496 = vpop.f32.mrb[0].mxu0
    %v497 = vadd.f32 0.0, %v496
    %v498 = vpop.f32.mrb[0].mxu0
    %v499 = vadd.f32 0.0, %v498
    %500 = vdwg.mxu0
    %501 = vmatprep.subr.mxu0 %v369
    %502 = vmatpush1.msra.mxu0 %v368
    %503 = vmatprep.subr.mxu0 %v373
    %504 = vmatpush1.msra.mxu0 %v372
    %505 = vmatprep.subr.mxu0 %v377
    %506 = vmatpush1.msra.mxu0 %v376
    %507 = vmatprep.subr.mxu0 %v381
    %508 = vmatpush1.msra.mxu0 %v380
    %509 = vmatprep.subr.mxu0 %v385
    %510 = vmatpush1.msra.mxu0 %v384
    %511 = vmatprep.subr.mxu0 %v389
    %512 = vmatpush1.msra.mxu0 %v388
    %513 = vmatprep.subr.mxu0 %v393
    %514 = vmatpush1.msra.mxu0 %v392
    %515 = vmatprep.subr.mxu0 %v397
    %516 = vmatpush1.msra.mxu0 %v396
    %517 = vmatprep.subr.mxu0 %v401
    %518 = vmatpush1.msra.mxu0 %v400
    %519 = vmatprep.subr.mxu0 %v405
    %520 = vmatpush1.msra.mxu0 %v404
    %521 = vmatprep.subr.mxu0 %v409
    %522 = vmatpush1.msra.mxu0 %v408
    %523 = vmatprep.subr.mxu0 %v413
    %524 = vmatpush1.msra.mxu0 %v412
    %525 = vmatprep.subr.mxu0 %v417
    %526 = vmatpush1.msra.mxu0 %v416
    %527 = vmatprep.subr.mxu0 %v421
    %528 = vmatpush1.msra.mxu0 %v420
    %529 = vmatprep.subr.mxu0 %v425
    %530 = vmatpush1.msra.mxu0 %v424
    %531 = vmatprep.subr.mxu0 %v429
    %532 = vmatpush1.msra.mxu0 %v428
    %533 = vmatprep.subr.mxu0 0.0
    %534 = vmatpush1.msra.mxu0 0.0
    %535 = vmatprep.subr.mxu0 0.0
    %536 = vmatpush1.msra.mxu0 0.0
    %537 = vmatprep.subr.mxu0 0.0
    %538 = vmatpush1.msra.mxu0 0.0
    %539 = vmatprep.subr.mxu0 0.0
    %540 = vmatpush1.msra.mxu0 0.0
    %541 = vmatprep.subr.mxu0 0.0
    %542 = vmatpush1.msra.mxu0 0.0
    %543 = vmatprep.subr.mxu0 0.0
    %544 = vmatpush1.msra.mxu0 0.0
    %545 = vmatprep.subr.mxu0 0.0
    %546 = vmatpush1.msra.mxu0 0.0
    %547 = vmatprep.subr.mxu0 0.0
    %548 = vmatpush1.msra.mxu0 0.0
    %549 = vmatprep.subr.mxu0 0.0
    %550 = vmatpush1.msra.mxu0 0.0
    %551 = vmatprep.subr.mxu0 0.0
    %552 = vmatpush1.msra.mxu0 0.0
    %553 = vmatprep.subr.mxu0 0.0
    %554 = vmatpush1.msra.mxu0 0.0
    %555 = vmatprep.subr.mxu0 0.0
    %556 = vmatpush1.msra.mxu0 0.0
    %557 = vmatprep.subr.mxu0 0.0
    %558 = vmatpush1.msra.mxu0 0.0
    %559 = vmatprep.subr.mxu0 0.0
    %560 = vmatpush1.msra.mxu0 0.0
    %561 = vmatprep.subr.mxu0 0.0
    %562 = vmatpush1.msra.mxu0 0.0
    %563 = vmatprep.subr.mxu0 0.0
    %564 = vmatpush1.msra.mxu0 0.0
    %565 = vmatprep.mubr.f32.mxu0 0.0
    %566 = vmatmul.mubr.f32.gmra.mrb[0].mxu0 %v365
    %v567 = vpop.f32.mrb[0].mxu0
    %v568 = vadd.f32 0.0, %v567
    %v569 = vpop.f32.mrb[0].mxu0
    %v570 = vadd.f32 0.0, %v569
    %571 = vdwg.mxu0
    %v572 = vmul.f32 %v363, %v364
    %v573 = vadd.f32 %v203, %v572
    %v574 = vmul.f32 %v274, %v497
    %v575 = vadd.f32 %v573, %v574
    %v576 = vmul.f32 %v276, %v499
    %v577 = vadd.f32 %v575, %v576
    %v578 = vmul.f32 %v345, %v568
    %v579 = vadd.f32 %v577, %v578
    %v580 = vmul.f32 %v347, %v570
    %v581 = vadd.f32 %v579, %v580
    %v582 = vmul.f32 %v581, 0.6666667
    %583 = vst [vmem:[#allocation10] sm:$0xff] %v582
    // Predicated region
    $region42: #{tpu_custom_call.1} parent=1 // pred_check
      _
    $region43: #{tpu_custom_call.1} parent=1 // pred_check_branch
      %585 = sbr.rel (0) target = $region45
    $region44: #{tpu_custom_call.1} parent=1 // pred_region
      %s587 = ssub.s32 128, 128
      %588 = vsyncadd [#allocation4], %s587
      %s590 = sshll.u32 [#allocation10], 4
      %s591 = int_to_ptr.vmem [resolvable:$true] %s590
      %593 = dma.vmem_to_hbm [thread:$0]  %s591, 128, %s6, [#allocation4]
    $region45: #{tpu_custom_call.1} parent=1 // pred_fallthru
      _
    // Predicated region
    $region46: #{tpu_custom_call.1} parent=1 // pred_check
      _
    $region47: #{tpu_custom_call.1} parent=1 // pred_check_branch
      %595 = sbr.rel (0) target = $region49
    $region48: #{tpu_custom_call.1} parent=1 // pred_region
      %596 = dma.done [#allocation4], 128
    $region49: #{tpu_custom_call.1} parent=1 // pred_fallthru
      _
    %597 = vsyncpa [#allocation3], 1
    %598 = vsyncpa [#allocation6], 1
    %599 = vsyncpa [#allocation9], 1
    %600 = vsyncpa [#allocation4], 1

</llo_original>
